<compile_context>
chip_gen: v7x
topology: tpu7x:2x2x1
jax: 0.10.0
libtpu: 0.0.40
codegen_flags: <defaults>
</compile_context>

<pallas_src>
import math

import jax
import jax.numpy as jnp
from jax.experimental import pallas as pl
from jax.experimental.pallas import tpu as pltpu

# ---------------------------------------------------------------------------
# Problem configuration (matches MLPSquashedReparamGaussianPolicy.__init__)
# ---------------------------------------------------------------------------
OBS_DIM = 16
ACT_DIM = 8
HIDDEN = [32, 32]            # hidden_size; MLP hidden = HIDDEN[:-1], MLP out = HIDDEN[-1]
ACT_BOUND = 1.0
LOG_STD_MAX = 2.0
LOG_STD_MIN = -20.0

_LOG_2PI = math.log(2.0 * math.pi)

H1, H2 = HIDDEN
IN_DIM = OBS_DIM + ACT_DIM    # packed input lanes: [obs | eps]
OUT_LANES = 128               # lane-dense packed output slab width

# Packed parameter slab layout (rows 8-aligned so every in-kernel slice is
# sublane-aligned; columns are the full 32-lane width so no lane sub-slicing
# of the ref is ever needed):
PCOLS = 32
R_W1 = 0                      # (OBS_DIM, H1)            rows  0..15
R_B1 = 16                     # (1, H1)                  row  16
R_W2 = 24                     # (H1, H2)                 rows 24..55
R_B2 = 56                     # (1, H2)                  row  56
R_WH = 64                     # (H2, 32): mu cols 0..7, log_std cols 8..15, rest 0
R_BH = 96                     # (1, 32)                  row  96
PROWS = 104


# ---------------------------------------------------------------------------
# Kernel
# ---------------------------------------------------------------------------
def policy_fwd_kernel(xin_ref, params_ref, out_ref):
    x = xin_ref[...]                               # (Bp, IN_DIM)
    obs = x[:, :OBS_DIM]                           # (Bp, 16)
    eps = x[:, OBS_DIM:IN_DIM]                     # (Bp, 8)

    # Statically sliced, sublane-aligned views of the resident parameter slab.
    w1 = params_ref[R_W1:R_W1 + OBS_DIM, :]        # (16, 32)
    b1 = params_ref[R_B1:R_B1 + 1, :]              # (1, 32)
    w2 = params_ref[R_W2:R_W2 + H1, :]             # (32, 32)
    b2 = params_ref[R_B2:R_B2 + 1, :]              # (1, 32)
    wh = params_ref[R_WH:R_WH + H2, :]             # (32, 32) fused mu|log_std head
    bh = params_ref[R_BH:R_BH + 1, :]              # (1, 32)

    # Trunk MLP: Linear + ReLU, Linear + ReLU (output_activation is ReLU too).
    h = jnp.maximum(jnp.dot(obs, w1, preferred_element_type=jnp.float32) + b1, 0.0)
    h = jnp.maximum(jnp.dot(h, w2, preferred_element_type=jnp.float32) + b2, 0.0)

    # Fused heads: one matmul produces [mu | log_std | zero-pad].
    heads = jnp.dot(h, wh, preferred_element_type=jnp.float32) + bh     # (Bp, 32)
    mu = heads[:, :ACT_DIM]
    log_std = jnp.clip(heads[:, ACT_DIM:2 * ACT_DIM], LOG_STD_MIN, LOG_STD_MAX)
    std = jnp.exp(log_std)

    # Reparameterized sample + tanh squash.
    u = mu + std * eps                             # dist.rsample()
    a = jnp.tanh(u)
    action = ACT_BOUND * a
    mu_action = ACT_BOUND * jnp.tanh(mu)

    # log_prob = sum_dim1[ Normal(mu, std).log_prob(u) - log(1 - a^2 + 1e-6) ]
    # with u = mu + std*eps:  Normal.log_prob(u) == -0.5*eps^2 - log_std - 0.5*log(2*pi)
    lp_elem = (-0.5 * eps * eps - log_std - 0.5 * _LOG_2PI
               - jnp.log(1.0 - a * a + 1e-6))
    logp = jnp.sum(lp_elem, axis=1, keepdims=True)                      # (Bp, 1)

    # One lane-dense, unmasked store: [action | mu_action | logp | zeros].
    bp = action.shape[0]
    pad = jnp.zeros((bp, OUT_LANES - (2 * ACT_DIM + 1)), jnp.float32)
    out_ref[...] = jnp.concatenate([action, mu_action, logp, pad], axis=1)


# ---------------------------------------------------------------------------
# Wrapper
# ---------------------------------------------------------------------------
def pack_params(params):
    """Pack the 8 Linear weights/biases into one 8-row-aligned (104, 32) slab."""
    w1, b1, w2, b2, wmu, bmu, wls, bls = params
    slab = jnp.zeros((PROWS, PCOLS), jnp.float32)
    slab = slab.at[R_W1:R_W1 + OBS_DIM, :H1].set(w1)
    slab = slab.at[R_B1, :H1].set(b1.reshape(-1))
    slab = slab.at[R_W2:R_W2 + H1, :H2].set(w2)
    slab = slab.at[R_B2, :H2].set(b2.reshape(-1))
    slab = slab.at[R_WH:R_WH + H2, :ACT_DIM].set(wmu)
    slab = slab.at[R_WH:R_WH + H2, ACT_DIM:2 * ACT_DIM].set(wls)
    slab = slab.at[R_BH, :ACT_DIM].set(bmu.reshape(-1))
    slab = slab.at[R_BH, ACT_DIM:2 * ACT_DIM].set(bls.reshape(-1))
    return slab


def policy_forward(obs, eps, param_slab):
    """obs: (B, OBS_DIM) f32, eps: (B, ACT_DIM) f32 -> (action, log_prob, mu_action)."""
    B = obs.shape[0]
    Bp = ((B + 7) // 8) * 8                        # pad batch to sublane multiple

    xin = jnp.concatenate([obs, eps], axis=1)      # single batch-tiled input operand
    if Bp != B:
        xin = jnp.pad(xin, ((0, Bp - B), (0, 0)))

    # Single grid step: whole working set (<1 MiB) sits in VMEM on every
    # generation (including v7x's 64 MiB).  On v7x a grid=(2,) CORE_PARALLEL
    # split is possible but buys ~nothing at this size.
    flops = 2 * Bp * (OBS_DIM * H1 + H1 * H2 + H2 * PCOLS)
    transcendentals = 4 * Bp * ACT_DIM             # exp, 2x tanh, log
    bytes_accessed = 4 * (Bp * IN_DIM + PROWS * PCOLS + Bp * OUT_LANES)

    out = pl.pallas_call(
        policy_fwd_kernel,
        out_shape=jax.ShapeDtypeStruct((Bp, OUT_LANES), jnp.float32),
        grid=(1,),
        in_specs=[
            pl.BlockSpec((Bp, IN_DIM), lambda i: (0, 0)),      # [obs | eps]
            pl.BlockSpec((PROWS, PCOLS), lambda i: (0, 0)),    # packed params (resident)
        ],
        out_specs=pl.BlockSpec((Bp, OUT_LANES), lambda i: (0, 0)),
        compiler_params=pltpu.CompilerParams(
            dimension_semantics=("arbitrary",),
        ),
        cost_estimate=pl.CostEstimate(
            flops=flops,
            transcendentals=transcendentals,
            bytes_accessed=bytes_accessed,
        ),
    )(xin, param_slab)

    action = out[:B, :ACT_DIM]
    mu_action = out[:B, ACT_DIM:2 * ACT_DIM]
    log_prob = out[:B, 2 * ACT_DIM]
    return action, log_prob, mu_action


# ---------------------------------------------------------------------------
# Parameter init + pure-JAX reference (correctness check)
# ---------------------------------------------------------------------------
def init_params(key):
    """Deterministic synthetic weights; PyTorch-Linear-style U(-1/sqrt(fan_in), ...).
    Weights stored (in_features, out_features) = transpose of nn.Linear.weight."""
    shapes = [
        (OBS_DIM, H1),     # mlp layer 1
        (H1, H2),          # mlp layer 2 (output activation = ReLU)
        (H2, ACT_DIM),     # fc_mu
        (H2, ACT_DIM),     # fc_log_std
    ]
    keys = jax.random.split(key, 2 * len(shapes))
    params = []
    for j, (fan_in, fan_out) in enumerate(shapes):
        scale = 1.0 / math.sqrt(fan_in)
        w = jax.random.uniform(keys[2 * j], (fan_in, fan_out),
                               minval=-scale, maxval=scale, dtype=jnp.float32)
        b = jax.random.uniform(keys[2 * j + 1], (1, fan_out),
                               minval=-scale, maxval=scale, dtype=jnp.float32)
        params += [w, b]
    return tuple(params)


def reference(obs, eps, params):
    """Pure-JAX reference of the same forward pass."""
    w1, b1, w2, b2, wmu, bmu, wls, bls = params
    h = jnp.maximum(obs @ w1 + b1, 0.0)
    h = jnp.maximum(h @ w2 + b2, 0.0)
    mu = h @ wmu + bmu
    log_std = jnp.clip(h @ wls + bls, LOG_STD_MIN, LOG_STD_MAX)
    std = jnp.exp(log_std)
    u = mu + std * eps
    a = jnp.tanh(u)
    action = ACT_BOUND * a
    lp = (-((u - mu) ** 2) / (2.0 * std ** 2) - log_std - 0.5 * _LOG_2PI
          - jnp.log(1.0 - a ** 2 + 1e-6))
    log_prob = jnp.sum(lp, axis=1)
    mu_action = ACT_BOUND * jnp.tanh(mu)
    return action, log_prob, mu_action


if __name__ == "__main__":
    key = jax.random.PRNGKey(0)
    k_obs, k_eps, k_params = jax.random.split(key, 3)

    BATCH = 100   # deliberately not a multiple of 8: exercises the padding path
    obs = jax.random.normal(k_obs, (BATCH, OBS_DIM), dtype=jnp.float32)
    eps = jax.random.normal(k_eps, (BATCH, ACT_DIM), dtype=jnp.float32)  # rsample noise
    params = init_params(k_params)
    param_slab = pack_params(params)

    action, log_prob, mu_action = policy_forward(obs, eps, param_slab)
    action, log_prob, mu_action = jax.block_until_ready((action, log_prob, mu_action))

    a_ref, lp_ref, ma_ref = reference(obs, eps, params)
    assert action.shape == (BATCH, ACT_DIM)
    assert log_prob.shape == (BATCH,)
    assert mu_action.shape == (BATCH, ACT_DIM)
    assert jnp.allclose(action, a_ref, atol=1e-5, rtol=1e-5)
    assert jnp.allclose(mu_action, ma_ref, atol=1e-5, rtol=1e-5)
    assert jnp.allclose(log_prob, lp_ref, atol=1e-4, rtol=1e-4)

    print("KERNEL_OK")
</pallas_src>

<mosaic_0001>
module attributes {stable_mosaic.version = 11 : i64} {
  func.func @policy_fwd_kernel(%arg0: i32, %arg1: memref<104x24xf32, #tpu.memory_space<vmem>>, %arg2: memref<104x32xf32, #tpu.memory_space<vmem>>, %arg3: memref<104x128xf32, #tpu.memory_space<vmem>>) attributes {dimension_semantics = [#tpu.dimension_semantics<arbitrary>], iteration_bounds = array<i64: 1>, scalar_prefetch = 0 : i64, scratch_operands = 0 : i64, tpu.core_type = #tpu.core_type<tc>, window_params = [{pipeline_mode = #tpu.pipeline_mode<synchronous>, transform_indices = @transform_0, window_bounds = array<i64: 104, 24>}, {pipeline_mode = #tpu.pipeline_mode<synchronous>, transform_indices = @transform_1, window_bounds = array<i64: 104, 32>}, {pipeline_mode = #tpu.pipeline_mode<synchronous>, transform_indices = @transform_2, window_bounds = array<i64: 104, 128>}]} {
    %c0 = arith.constant 0 : index
    %c0_0 = arith.constant 0 : index
    %0 = vector.load %arg1[%c0, %c0_0] : memref<104x24xf32, #tpu.memory_space<vmem>>, vector<104x24xf32>
    %1 = vector.extract_strided_slice %0 {offsets = [0, 0], sizes = [104, 16], strides = [1, 1]} : vector<104x24xf32> to vector<104x16xf32>
    %2 = vector.extract_strided_slice %0 {offsets = [0, 16], sizes = [104, 8], strides = [1, 1]} : vector<104x24xf32> to vector<104x8xf32>
    %c0_1 = arith.constant 0 : index
    %c0_2 = arith.constant 0 : index
    %3 = vector.load %arg2[%c0_1, %c0_2] : memref<104x32xf32, #tpu.memory_space<vmem>>, vector<16x32xf32>
    %c16 = arith.constant 16 : index
    %c0_3 = arith.constant 0 : index
    %4 = vector.load %arg2[%c16, %c0_3] : memref<104x32xf32, #tpu.memory_space<vmem>>, vector<1x32xf32>
    %c24 = arith.constant 24 : index
    %c0_4 = arith.constant 0 : index
    %5 = vector.load %arg2[%c24, %c0_4] : memref<104x32xf32, #tpu.memory_space<vmem>>, vector<32x32xf32>
    %c56 = arith.constant 56 : index
    %c0_5 = arith.constant 0 : index
    %6 = vector.load %arg2[%c56, %c0_5] : memref<104x32xf32, #tpu.memory_space<vmem>>, vector<1x32xf32>
    %c64 = arith.constant 64 : index
    %c0_6 = arith.constant 0 : index
    %7 = vector.load %arg2[%c64, %c0_6] : memref<104x32xf32, #tpu.memory_space<vmem>>, vector<32x32xf32>
    %c96 = arith.constant 96 : index
    %c0_7 = arith.constant 0 : index
    %8 = vector.load %arg2[%c96, %c0_7] : memref<104x32xf32, #tpu.memory_space<vmem>>, vector<1x32xf32>
    %cst = arith.constant dense<0.000000e+00> : vector<104x32xf32>
    %9 = tpu.matmul %1, %3, %cst {dimension_numbers = #tpu.dot_dimension_numbers<[1], [0], [0], [1], [0, 0, 1, 1], [], []>} : vector<104x16xf32>, vector<16x32xf32>, vector<104x32xf32> -> vector<104x32xf32>
    %10 = vector.broadcast %4 : vector<1x32xf32> to vector<104x32xf32>
    %11 = arith.addf %9, %10 : vector<104x32xf32>
    %cst_8 = arith.constant 0.000000e+00 : f32
    %12 = vector.broadcast %cst_8 : f32 to vector<104x32xf32>
    %13 = arith.maximumf %11, %12 : vector<104x32xf32>
    %cst_9 = arith.constant dense<0.000000e+00> : vector<104x32xf32>
    %14 = tpu.matmul %13, %5, %cst_9 {dimension_numbers = #tpu.dot_dimension_numbers<[1], [0], [0], [1], [0, 0, 1, 1], [], []>} : vector<104x32xf32>, vector<32x32xf32>, vector<104x32xf32> -> vector<104x32xf32>
    %15 = vector.broadcast %6 : vector<1x32xf32> to vector<104x32xf32>
    %16 = arith.addf %14, %15 : vector<104x32xf32>
    %cst_10 = arith.constant 0.000000e+00 : f32
    %17 = vector.broadcast %cst_10 : f32 to vector<104x32xf32>
    %18 = arith.maximumf %16, %17 : vector<104x32xf32>
    %cst_11 = arith.constant dense<0.000000e+00> : vector<104x32xf32>
    %19 = tpu.matmul %18, %7, %cst_11 {dimension_numbers = #tpu.dot_dimension_numbers<[1], [0], [0], [1], [0, 0, 1, 1], [], []>} : vector<104x32xf32>, vector<32x32xf32>, vector<104x32xf32> -> vector<104x32xf32>
    %20 = vector.broadcast %8 : vector<1x32xf32> to vector<104x32xf32>
    %21 = arith.addf %19, %20 : vector<104x32xf32>
    %22 = vector.extract_strided_slice %21 {offsets = [0, 0], sizes = [104, 8], strides = [1, 1]} : vector<104x32xf32> to vector<104x8xf32>
    %23 = vector.extract_strided_slice %21 {offsets = [0, 8], sizes = [104, 8], strides = [1, 1]} : vector<104x32xf32> to vector<104x8xf32>
    %cst_12 = arith.constant -2.000000e+01 : f32
    %cst_13 = arith.constant 2.000000e+00 : f32
    %24 = vector.broadcast %cst_12 : f32 to vector<104x8xf32>
    %25 = arith.maximumf %24, %23 : vector<104x8xf32>
    %26 = vector.broadcast %cst_13 : f32 to vector<104x8xf32>
    %27 = arith.minimumf %26, %25 : vector<104x8xf32>
    %28 = math.exp %27 : vector<104x8xf32>
    %29 = arith.mulf %28, %2 : vector<104x8xf32>
    %30 = arith.addf %22, %29 : vector<104x8xf32>
    %31 = math.tanh %30 : vector<104x8xf32>
    %cst_14 = arith.constant 1.000000e+00 : f32
    %32 = vector.broadcast %cst_14 : f32 to vector<104x8xf32>
    %33 = arith.mulf %32, %31 : vector<104x8xf32>
    %34 = math.tanh %22 : vector<104x8xf32>
    %cst_15 = arith.constant 1.000000e+00 : f32
    %35 = vector.broadcast %cst_15 : f32 to vector<104x8xf32>
    %36 = arith.mulf %35, %34 : vector<104x8xf32>
    %cst_16 = arith.constant -5.000000e-01 : f32
    %37 = vector.broadcast %cst_16 : f32 to vector<104x8xf32>
    %38 = arith.mulf %37, %2 : vector<104x8xf32>
    %39 = arith.mulf %38, %2 : vector<104x8xf32>
    %40 = arith.subf %39, %27 : vector<104x8xf32>
    %cst_17 = arith.constant 0.918938517 : f32
    %41 = vector.broadcast %cst_17 : f32 to vector<104x8xf32>
    %42 = arith.subf %40, %41 : vector<104x8xf32>
    %43 = arith.mulf %31, %31 : vector<104x8xf32>
    %cst_18 = arith.constant 1.000000e+00 : f32
    %44 = vector.broadcast %cst_18 : f32 to vector<104x8xf32>
    %45 = arith.subf %44, %43 : vector<104x8xf32>
    %cst_19 = arith.constant 9.99999997E-7 : f32
    %46 = vector.broadcast %cst_19 : f32 to vector<104x8xf32>
    %47 = arith.addf %45, %46 : vector<104x8xf32>
    %48 = math.log %47 : vector<104x8xf32>
    %49 = arith.subf %42, %48 : vector<104x8xf32>
    %cst_20 = arith.constant dense<0.000000e+00> : vector<104xf32>
    %50 = vector.multi_reduction <add>, %49, %cst_20 [1] : vector<104x8xf32> to vector<104xf32>
    %51 = vector.shape_cast %50 : vector<104xf32> to vector<104x1xf32>
    %cst_21 = arith.constant 0.000000e+00 : f32
    %52 = vector.broadcast %cst_21 : f32 to vector<104x111xf32>
    %53 = tpu.concatenate %33, %36, %51, %52 in 1 : vector<104x8xf32>, vector<104x8xf32>, vector<104x1xf32>, vector<104x111xf32> -> vector<104x128xf32>
    %c0_22 = arith.constant 0 : index
    %c0_23 = arith.constant 0 : index
    %54 = vector.load %arg3[%c0_22, %c0_23] : memref<104x128xf32, #tpu.memory_space<vmem>>, vector<104x128xf32>
    tpu.vector_store %arg3[%c0_22, %c0_23], %53 {strides = array<i32>} : memref<104x128xf32, #tpu.memory_space<vmem>>, vector<104x128xf32>,
    return
  }
  func.func @transform_0(%arg0: i32) -> (i32, i32) {
    %c0_i32 = arith.constant 0 : i32
    %c0_i32_0 = arith.constant 0 : i32
    %c0_i32_1 = arith.constant 0 : i32
    return %c0_i32, %c0_i32_0 : i32, i32
  }
  func.func @transform_1(%arg0: i32) -> (i32, i32) {
    %c0_i32 = arith.constant 0 : i32
    %c0_i32_0 = arith.constant 0 : i32
    %c0_i32_1 = arith.constant 0 : i32
    return %c0_i32, %c0_i32_0 : i32, i32
  }
  func.func @transform_2(%arg0: i32) -> (i32, i32) {
    %c0_i32 = arith.constant 0 : i32
    %c0_i32_0 = arith.constant 0 : i32
    %c0_i32_1 = arith.constant 0 : i32
    return %c0_i32, %c0_i32_0 : i32, i32
  }
}

</mosaic_0001>

<llo_original>
// kernel: tpu_custom_call.1
$region0: #{tpu_custom_call.1}
  #allocation0 [shape = 'u32[]', space=smem, size = 0x4, offset = 0x4, fixed_abs, tag = 'smem constant byte address 0x4 - core index']
  #allocation1 [shape = 'u32[144,128]{1,0:T(1,128)}', space=vmem, size = 0x12000, scoped, tag = 'internal scratch']
  %s0 = inlined_call_operand.vmem [shape: f32[104,24], index: 0, kind: input, shape index: {}]
  %s1 = inlined_call_operand.vmem [shape: f32[104,32], index: 1, kind: input, shape index: {}]
  %s2 = inlined_call_operand.hbm [shape: f32[104,128], index: 2, kind: output, shape index: {}]
  %s3 = sld [smem:[#allocation0]]
  $region18: #{tpu_custom_call.1} parent=0
    _
  %s5 = ssub.s32 1, %s3
  %s6 = scalar_select 0, %s5, %s3
  $region1: #{tpu_custom_call.1} parent=0
    #allocation2 [shape = 'u8[53248]{0}', space=vmem, size = 0xd000, scoped, tag = 'output window, operand 0, single buffered']
    #allocation3 [shape = 's32[1]{0}', space=sflag, size = 0x4, scoped, tag = 'scoped memory for tpu_custom_call.1']
    %7 = vsyncpa [#allocation3], 0
    // Predicated region
    $region2: #{tpu_custom_call.1} parent=1 // pred_check
      _
    $region3: #{tpu_custom_call.1} parent=1 // pred_check_branch
      %9 = sbr.rel (0) target = $region5
    $region4: #{tpu_custom_call.1} parent=1 // pred_region
      _
    $region5: #{tpu_custom_call.1} parent=1 // pred_fallthru
      _
    // Predicated region
    $region6: #{tpu_custom_call.1} parent=1 // pred_check
      _
    $region7: #{tpu_custom_call.1} parent=1 // pred_check_branch
      %11 = sbr.rel (0) target = $region9
    $region8: #{tpu_custom_call.1} parent=1 // pred_region
      _
    $region9: #{tpu_custom_call.1} parent=1 // pred_fallthru
      _
    %v12 = vld [vmem:[%s0] sm:$0xff]
    %v13 = vld [vmem:[%s0 + $0x8] sm:$0xff]
    %v14 = vld [vmem:[%s0 + $0x10] sm:$0xff]
    %v15 = vld [vmem:[%s0 + $0x18] sm:$0xff]
    %v16 = vld [vmem:[%s0 + $0x20] sm:$0xff]
    %v17 = vld [vmem:[%s0 + $0x28] sm:$0xff]
    %v18 = vld [vmem:[%s0 + $0x30] sm:$0xff]
    %v19 = vld [vmem:[%s0 + $0x38] sm:$0xff]
    %v20 = vld [vmem:[%s0 + $0x40] sm:$0xff]
    %v21 = vld [vmem:[%s0 + $0x48] sm:$0xff]
    %v22 = vld [vmem:[%s0 + $0x50] sm:$0xff]
    %v23 = vld [vmem:[%s0 + $0x58] sm:$0xff]
    %v24 = vld [vmem:[%s0 + $0x60] sm:$0xff]
    %v25 = vld [vmem:[%s1] sm:$0xff]
    %v26 = vld [vmem:[%s1 + $0x8] sm:$0xff]
    %v27 = vld [vmem:[%s1 + $0x10] sm:$0x1]
    %v28 = vld [vmem:[%s1 + $0x18] sm:$0xff]
    %v29 = vld [vmem:[%s1 + $0x20] sm:$0xff]
    %v30 = vld [vmem:[%s1 + $0x28] sm:$0xff]
    %v31 = vld [vmem:[%s1 + $0x30] sm:$0xff]
    %v32 = vld [vmem:[%s1 + $0x38] sm:$0x1]
    %v33 = vld [vmem:[%s1 + $0x40] sm:$0xff]
    %v34 = vld [vmem:[%s1 + $0x48] sm:$0xff]
    %v35 = vld [vmem:[%s1 + $0x50] sm:$0xff]
    %v36 = vld [vmem:[%s1 + $0x58] sm:$0xff]
    %v37 = vld [vmem:[%s1 + $0x60] sm:$0x1]
    %v38 = vlaneseq
    %v39 = vshrl.u32 %v38, 7
    %v40 = vsub.s32 0, %v39
    %v41 = vrot.slane %v27, %v40
    %vm42 = vcmask 130048
    %v44 = vsel %vm42, %v12, 0
    %v47 = vsel %vm42, %v13, 0
    %v50 = vsel %vm42, %v14, 0
    %v53 = vsel %vm42, %v15, 0
    %v56 = vsel %vm42, %v16, 0
    %v59 = vsel %vm42, %v17, 0
    %v62 = vsel %vm42, %v18, 0
    %v65 = vsel %vm42, %v19, 0
    %v68 = vsel %vm42, %v20, 0
    %v71 = vsel %vm42, %v21, 0
    %v74 = vsel %vm42, %v22, 0
    %v77 = vsel %vm42, %v23, 0
    %v80 = vsel %vm42, %v24, 0
    %82 = vmatprep.subr.mxu0 0.0
    %83 = vmatpush1.msra.mxu0 %v25
    %84 = vmatprep.subr.mxu0 0.0
    %85 = vmatpush1.msra.mxu0 %v26
    %86 = vmatprep.subr.mxu0 0.0
    %87 = vmatpush1.msra.mxu0 0.0
    %88 = vmatprep.subr.mxu0 0.0
    %89 = vmatpush1.msra.mxu0 0.0
    %90 = vmatprep.subr.mxu0 0.0
    %91 = vmatpush1.msra.mxu0 0.0
    %92 = vmatprep.subr.mxu0 0.0
    %93 = vmatpush1.msra.mxu0 0.0
    %94 = vmatprep.subr.mxu0 0.0
    %95 = vmatpush1.msra.mxu0 0.0
    %96 = vmatprep.subr.mxu0 0.0
    %97 = vmatpush1.msra.mxu0 0.0
    %98 = vmatprep.subr.mxu0 0.0
    %99 = vmatpush1.msra.mxu0 0.0
    %100 = vmatprep.subr.mxu0 0.0
    %101 = vmatpush1.msra.mxu0 0.0
    %102 = vmatprep.subr.mxu0 0.0
    %103 = vmatpush1.msra.mxu0 0.0
    %104 = vmatprep.subr.mxu0 0.0
    %105 = vmatpush1.msra.mxu0 0.0
    %106 = vmatprep.subr.mxu0 0.0
    %107 = vmatpush1.msra.mxu0 0.0
    %108 = vmatprep.subr.mxu0 0.0
    %109 = vmatpush1.msra.mxu0 0.0
    %110 = vmatprep.subr.mxu0 0.0
    %111 = vmatpush1.msra.mxu0 0.0
    %112 = vmatprep.subr.mxu0 0.0
    %113 = vmatpush1.msra.mxu0 0.0
    %114 = vmatprep.subr.mxu0 0.0
    %115 = vmatpush1.msra.mxu0 0.0
    %116 = vmatprep.subr.mxu0 0.0
    %117 = vmatpush1.msra.mxu0 0.0
    %118 = vmatprep.subr.mxu0 0.0
    %119 = vmatpush1.msra.mxu0 0.0
    %120 = vmatprep.subr.mxu0 0.0
    %121 = vmatpush1.msra.mxu0 0.0
    %122 = vmatprep.subr.mxu0 0.0
    %123 = vmatpush1.msra.mxu0 0.0
    %124 = vmatprep.subr.mxu0 0.0
    %125 = vmatpush1.msra.mxu0 0.0
    %126 = vmatprep.subr.mxu0 0.0
    %127 = vmatpush1.msra.mxu0 0.0
    %128 = vmatprep.subr.mxu0 0.0
    %129 = vmatpush1.msra.mxu0 0.0
    %130 = vmatprep.subr.mxu0 0.0
    %131 = vmatpush1.msra.mxu0 0.0
    %132 = vmatprep.subr.mxu0 0.0
    %133 = vmatpush1.msra.mxu0 0.0
    %134 = vmatprep.subr.mxu0 0.0
    %135 = vmatpush1.msra.mxu0 0.0
    %136 = vmatprep.subr.mxu0 0.0
    %137 = vmatpush1.msra.mxu0 0.0
    %138 = vmatprep.subr.mxu0 0.0
    %139 = vmatpush1.msra.mxu0 0.0
    %140 = vmatprep.subr.mxu0 0.0
    %141 = vmatpush1.msra.mxu0 0.0
    %142 = vmatprep.subr.mxu0 0.0
    %143 = vmatpush1.msra.mxu0 0.0
    %144 = vmatprep.subr.mxu0 0.0
    %145 = vmatpush1.msra.mxu0 0.0
    %146 = vmatprep.mubr.f32.mxu0 0.0
    %147 = vmatmul.mubr.f32.gmra.mrb[0].mxu0 %v44
    %v148 = vpop.f32.mrb[0].mxu0
    %v149 = vadd.f32 %v41, %v148
    %v150 = vpop.f32.mrb[0].mxu0
    %151 = vmatprep.mubr.f32.mxu0 0.0
    %152 = vmatmul.mubr.f32.gmra.mrb[0].mxu0 %v47
    %v153 = vpop.f32.mrb[0].mxu0
    %v154 = vadd.f32 %v41, %v153
    %v155 = vpop.f32.mrb[0].mxu0
    %156 = vmatprep.mubr.f32.mxu0 0.0
    %157 = vmatmul.mubr.f32.gmra.mrb[0].mxu0 %v50
    %v158 = vpop.f32.mrb[0].mxu0
    %v159 = vadd.f32 %v41, %v158
    %v160 = vpop.f32.mrb[0].mxu0
    %161 = vmatprep.mubr.f32.mxu0 0.0
    %162 = vmatmul.mubr.f32.gmra.mrb[0].mxu0 %v53
    %v163 = vpop.f32.mrb[0].mxu0
    %v164 = vadd.f32 %v41, %v163
    %v165 = vpop.f32.mrb[0].mxu0
    %166 = vmatprep.mubr.f32.mxu0 0.0
    %167 = vmatmul.mubr.f32.gmra.mrb[0].mxu0 %v56
    %v168 = vpop.f32.mrb[0].mxu0
    %v169 = vadd.f32 %v41, %v168
    %v170 = vpop.f32.mrb[0].mxu0
    %171 = vmatprep.mubr.f32.mxu0 0.0
    %172 = vmatmul.mubr.f32.gmra.mrb[0].mxu0 %v59
    %v173 = vpop.f32.mrb[0].mxu0
    %v174 = vadd.f32 %v41, %v173
    %v175 = vpop.f32.mrb[0].mxu0
    %176 = vmatprep.mubr.f32.mxu0 0.0
    %177 = vmatmul.mubr.f32.gmra.mrb[0].mxu0 %v62
    %v178 = vpop.f32.mrb[0].mxu0
    %v179 = vadd.f32 %v41, %v178
    %v180 = vpop.f32.mrb[0].mxu0
    %181 = vmatprep.mubr.f32.mxu0 0.0
    %182 = vmatmul.mubr.f32.gmra.mrb[0].mxu0 %v65
    %v183 = vpop.f32.mrb[0].mxu0
    %v184 = vadd.f32 %v41, %v183
    %v185 = vpop.f32.mrb[0].mxu0
    %186 = vmatprep.mubr.f32.mxu0 0.0
    %187 = vmatmul.mubr.f32.gmra.mrb[0].mxu0 %v68
    %v188 = vpop.f32.mrb[0].mxu0
    %v189 = vadd.f32 %v41, %v188
    %v190 = vpop.f32.mrb[0].mxu0
    %191 = vmatprep.mubr.f32.mxu0 0.0
    %192 = vmatmul.mubr.f32.gmra.mrb[0].mxu0 %v71
    %v193 = vpop.f32.mrb[0].mxu0
    %v194 = vadd.f32 %v41, %v193
    %v195 = vpop.f32.mrb[0].mxu0
    %196 = vmatprep.mubr.f32.mxu0 0.0
    %197 = vmatmul.mubr.f32.gmra.mrb[0].mxu0 %v74
    %v198 = vpop.f32.mrb[0].mxu0
    %v199 = vadd.f32 %v41, %v198
    %v200 = vpop.f32.mrb[0].mxu0
    %201 = vmatprep.mubr.f32.mxu0 0.0
    %202 = vmatmul.mubr.f32.gmra.mrb[0].mxu0 %v77
    %v203 = vpop.f32.mrb[0].mxu0
    %v204 = vadd.f32 %v41, %v203
    %v205 = vpop.f32.mrb[0].mxu0
    %206 = vmatprep.mubr.f32.mxu0 0.0
    %207 = vmatmul.mubr.f32.gmra.mrb[0].mxu0 %v80
    %v208 = vpop.f32.mrb[0].mxu0
    %v209 = vadd.f32 %v41, %v208
    %v210 = vpop.f32.mrb[0].mxu0
    %211 = vdwg.mxu0
    %v212 = vmax.f32 %v149, 0.0
    %v213 = vmax.f32 %v154, 0.0
    %v214 = vmax.f32 %v159, 0.0
    %v215 = vmax.f32 %v164, 0.0
    %v216 = vmax.f32 %v169, 0.0
    %v217 = vmax.f32 %v174, 0.0
    %v218 = vmax.f32 %v179, 0.0
    %v219 = vmax.f32 %v184, 0.0
    %v220 = vmax.f32 %v189, 0.0
    %v221 = vmax.f32 %v194, 0.0
    %v222 = vmax.f32 %v199, 0.0
    %v223 = vmax.f32 %v204, 0.0
    %v224 = vmax.f32 %v209, 0.0
    %v225 = vlaneseq
    %v226 = vshrl.u32 %v225, 7
    %v227 = vsub.s32 0, %v226
    %v228 = vrot.slane %v32, %v227
    %vm229 = vcmask 261120
    %v231 = vsel %vm229, %v212, 0
    %v234 = vsel %vm229, %v213, 0
    %v237 = vsel %vm229, %v214, 0
    %v240 = vsel %vm229, %v215, 0
    %v243 = vsel %vm229, %v216, 0
    %v246 = vsel %vm229, %v217, 0
    %v249 = vsel %vm229, %v218, 0
    %v252 = vsel %vm229, %v219, 0
    %v255 = vsel %vm229, %v220, 0
    %v258 = vsel %vm229, %v221, 0
    %v261 = vsel %vm229, %v222, 0
    %v264 = vsel %vm229, %v223, 0
    %v267 = vsel %vm229, %v224, 0
    %269 = vmatprep.subr.mxu0 0.0
    %270 = vmatpush1.msra.mxu0 %v28
    %271 = vmatprep.subr.mxu0 0.0
    %272 = vmatpush1.msra.mxu0 %v29
    %273 = vmatprep.subr.mxu0 0.0
    %274 = vmatpush1.msra.mxu0 %v30
    %275 = vmatprep.subr.mxu0 0.0
    %276 = vmatpush1.msra.mxu0 %v31
    %277 = vmatprep.subr.mxu0 0.0
    %278 = vmatpush1.msra.mxu0 0.0
    %279 = vmatprep.subr.mxu0 0.0
    %280 = vmatpush1.msra.mxu0 0.0
    %281 = vmatprep.subr.mxu0 0.0
    %282 = vmatpush1.msra.mxu0 0.0
    %283 = vmatprep.subr.mxu0 0.0
    %284 = vmatpush1.msra.mxu0 0.0
    %285 = vmatprep.subr.mxu0 0.0
    %286 = vmatpush1.msra.mxu0 0.0
    %287 = vmatprep.subr.mxu0 0.0
    %288 = vmatpush1.msra.mxu0 0.0
    %289 = vmatprep.subr.mxu0 0.0
    %290 = vmatpush1.msra.mxu0 0.0
    %291 = vmatprep.subr.mxu0 0.0
    %292 = vmatpush1.msra.mxu0 0.0
    %293 = vmatprep.subr.mxu0 0.0
    %294 = vmatpush1.msra.mxu0 0.0
    %295 = vmatprep.subr.mxu0 0.0
    %296 = vmatpush1.msra.mxu0 0.0
    %297 = vmatprep.subr.mxu0 0.0
    %298 = vmatpush1.msra.mxu0 0.0
    %299 = vmatprep.subr.mxu0 0.0
    %300 = vmatpush1.msra.mxu0 0.0
    %301 = vmatprep.subr.mxu0 0.0
    %302 = vmatpush1.msra.mxu0 0.0
    %303 = vmatprep.subr.mxu0 0.0
    %304 = vmatpush1.msra.mxu0 0.0
    %305 = vmatprep.subr.mxu0 0.0
    %306 = vmatpush1.msra.mxu0 0.0
    %307 = vmatprep.subr.mxu0 0.0
    %308 = vmatpush1.msra.mxu0 0.0
    %309 = vmatprep.subr.mxu0 0.0
    %310 = vmatpush1.msra.mxu0 0.0
    %311 = vmatprep.subr.mxu0 0.0
    %312 = vmatpush1.msra.mxu0 0.0
    %313 = vmatprep.subr.mxu0 0.0
    %314 = vmatpush1.msra.mxu0 0.0
    %315 = vmatprep.subr.mxu0 0.0
    %316 = vmatpush1.msra.mxu0 0.0
    %317 = vmatprep.subr.mxu0 0.0
    %318 = vmatpush1.msra.mxu0 0.0
    %319 = vmatprep.subr.mxu0 0.0
    %320 = vmatpush1.msra.mxu0 0.0
    %321 = vmatprep.subr.mxu0 0.0
    %322 = vmatpush1.msra.mxu0 0.0
    %323 = vmatprep.subr.mxu0 0.0
    %324 = vmatpush1.msra.mxu0 0.0
    %325 = vmatprep.subr.mxu0 0.0
    %326 = vmatpush1.msra.mxu0 0.0
    %327 = vmatprep.subr.mxu0 0.0
    %328 = vmatpush1.msra.mxu0 0.0
    %329 = vmatprep.subr.mxu0 0.0
    %330 = vmatpush1.msra.mxu0 0.0
    %331 = vmatprep.subr.mxu0 0.0
    %332 = vmatpush1.msra.mxu0 0.0
    %333 = vmatprep.mubr.f32.mxu0 0.0
    %334 = vmatmul.mubr.f32.gmra.mrb[0].mxu0 %v231
    %v335 = vpop.f32.mrb[0].mxu0
    %v336 = vadd.f32 %v228, %v335
    %v337 = vpop.f32.mrb[0].mxu0
    %338 = vmatprep.mubr.f32.mxu0 0.0
    %339 = vmatmul.mubr.f32.gmra.mrb[0].mxu0 %v234
    %v340 = vpop.f32.mrb[0].mxu0
    %v341 = vadd.f32 %v228, %v340
    %v342 = vpop.f32.mrb[0].mxu0
    %343 = vmatprep.mubr.f32.mxu0 0.0
    %344 = vmatmul.mubr.f32.gmra.mrb[0].mxu0 %v237
    %v345 = vpop.f32.mrb[0].mxu0
    %v346 = vadd.f32 %v228, %v345
    %v347 = vpop.f32.mrb[0].mxu0
    %348 = vmatprep.mubr.f32.mxu0 0.0
    %349 = vmatmul.mubr.f32.gmra.mrb[0].mxu0 %v240
    %v350 = vpop.f32.mrb[0].mxu0
    %v351 = vadd.f32 %v228, %v350
    %v352 = vpop.f32.mrb[0].mxu0
    %353 = vmatprep.mubr.f32.mxu0 0.0
    %354 = vmatmul.mubr.f32.gmra.mrb[0].mxu0 %v243
    %v355 = vpop.f32.mrb[0].mxu0
    %v356 = vadd.f32 %v228, %v355
    %v357 = vpop.f32.mrb[0].mxu0
    %358 = vmatprep.mubr.f32.mxu0 0.0
    %359 = vmatmul.mubr.f32.gmra.mrb[0].mxu0 %v246
    %v360 = vpop.f32.mrb[0].mxu0
    %v361 = vadd.f32 %v228, %v360
    %v362 = vpop.f32.mrb[0].mxu0
    %363 = vmatprep.mubr.f32.mxu0 0.0
    %364 = vmatmul.mubr.f32.gmra.mrb[0].mxu0 %v249
    %v365 = vpop.f32.mrb[0].mxu0
    %v366 = vadd.f32 %v228, %v365
    %v367 = vpop.f32.mrb[0].mxu0
    %368 = vmatprep.mubr.f32.mxu0 0.0
    %369 = vmatmul.mubr.f32.gmra.mrb[0].mxu0 %v252
    %v370 = vpop.f32.mrb[0].mxu0
    %v371 = vadd.f32 %v228, %v370
    %v372 = vpop.f32.mrb[0].mxu0
    %373 = vmatprep.mubr.f32.mxu0 0.0
    %374 = vmatmul.mubr.f32.gmra.mrb[0].mxu0 %v255
    %v375 = vpop.f32.mrb[0].mxu0
    %v376 = vadd.f32 %v228, %v375
    %v377 = vpop.f32.mrb[0].mxu0
    %378 = vmatprep.mubr.f32.mxu0 0.0
    %379 = vmatmul.mubr.f32.gmra.mrb[0].mxu0 %v258
    %v380 = vpop.f32.mrb[0].mxu0
    %v381 = vadd.f32 %v228, %v380
    %v382 = vpop.f32.mrb[0].mxu0
    %383 = vmatprep.mubr.f32.mxu0 0.0
    %384 = vmatmul.mubr.f32.gmra.mrb[0].mxu0 %v261
    %v385 = vpop.f32.mrb[0].mxu0
    %v386 = vadd.f32 %v228, %v385
    %v387 = vpop.f32.mrb[0].mxu0
    %388 = vmatprep.mubr.f32.mxu0 0.0
    %389 = vmatmul.mubr.f32.gmra.mrb[0].mxu0 %v264
    %v390 = vpop.f32.mrb[0].mxu0
    %v391 = vadd.f32 %v228, %v390
    %v392 = vpop.f32.mrb[0].mxu0
    %393 = vmatprep.mubr.f32.mxu0 0.0
    %394 = vmatmul.mubr.f32.gmra.mrb[0].mxu0 %v267
    %v395 = vpop.f32.mrb[0].mxu0
    %v396 = vadd.f32 %v228, %v395
    %v397 = vpop.f32.mrb[0].mxu0
    %398 = vdwg.mxu0
    %v399 = vmax.f32 %v336, 0.0
    %v400 = vmax.f32 %v341, 0.0
    %v401 = vmax.f32 %v346, 0.0
    %v402 = vmax.f32 %v351, 0.0
    %v403 = vmax.f32 %v356, 0.0
    %v404 = vmax.f32 %v361, 0.0
    %v405 = vmax.f32 %v366, 0.0
    %v406 = vmax.f32 %v371, 0.0
    %v407 = vmax.f32 %v376, 0.0
    %v408 = vmax.f32 %v381, 0.0
    %v409 = vmax.f32 %v386, 0.0
    %v410 = vmax.f32 %v391, 0.0
    %v411 = vmax.f32 %v396, 0.0
    %v412 = vlaneseq
    %v413 = vshrl.u32 %v412, 7
    %v414 = vsub.s32 0, %v413
    %v415 = vrot.slane %v37, %v414
    %v417 = vsel %vm229, %v399, 0
    %v420 = vsel %vm229, %v400, 0
    %v423 = vsel %vm229, %v401, 0
    %v426 = vsel %vm229, %v402, 0
    %v429 = vsel %vm229, %v403, 0
    %v432 = vsel %vm229, %v404, 0
    %v435 = vsel %vm229, %v405, 0
    %v438 = vsel %vm229, %v406, 0
    %v441 = vsel %vm229, %v407, 0
    %v444 = vsel %vm229, %v408, 0
    %v447 = vsel %vm229, %v409, 0
    %v450 = vsel %vm229, %v410, 0
    %v453 = vsel %vm229, %v411, 0
    %455 = vmatprep.subr.mxu0 0.0
    %456 = vmatpush1.msra.mxu0 %v33
    %457 = vmatprep.subr.mxu0 0.0
    %458 = vmatpush1.msra.mxu0 %v34
    %459 = vmatprep.subr.mxu0 0.0
    %460 = vmatpush1.msra.mxu0 %v35
    %461 = vmatprep.subr.mxu0 0.0
    %462 = vmatpush1.msra.mxu0 %v36
    %463 = vmatprep.subr.mxu0 0.0
    %464 = vmatpush1.msra.mxu0 0.0
    %465 = vmatprep.subr.mxu0 0.0
    %466 = vmatpush1.msra.mxu0 0.0
    %467 = vmatprep.subr.mxu0 0.0
    %468 = vmatpush1.msra.mxu0 0.0
    %469 = vmatprep.subr.mxu0 0.0
    %470 = vmatpush1.msra.mxu0 0.0
    %471 = vmatprep.subr.mxu0 0.0
    %472 = vmatpush1.msra.mxu0 0.0
    %473 = vmatprep.subr.mxu0 0.0
    %474 = vmatpush1.msra.mxu0 0.0
    %475 = vmatprep.subr.mxu0 0.0
    %476 = vmatpush1.msra.mxu0 0.0
    %477 = vmatprep.subr.mxu0 0.0
    %478 = vmatpush1.msra.mxu0 0.0
    %479 = vmatprep.subr.mxu0 0.0
    %480 = vmatpush1.msra.mxu0 0.0
    %481 = vmatprep.subr.mxu0 0.0
    %482 = vmatpush1.msra.mxu0 0.0
    %483 = vmatprep.subr.mxu0 0.0
    %484 = vmatpush1.msra.mxu0 0.0
    %485 = vmatprep.subr.mxu0 0.0
    %486 = vmatpush1.msra.mxu0 0.0
    %487 = vmatprep.subr.mxu0 0.0
    %488 = vmatpush1.msra.mxu0 0.0
    %489 = vmatprep.subr.mxu0 0.0
    %490 = vmatpush1.msra.mxu0 0.0
    %491 = vmatprep.subr.mxu0 0.0
    %492 = vmatpush1.msra.mxu0 0.0
    %493 = vmatprep.subr.mxu0 0.0
    %494 = vmatpush1.msra.mxu0 0.0
    %495 = vmatprep.subr.mxu0 0.0
    %496 = vmatpush1.msra.mxu0 0.0
    %497 = vmatprep.subr.mxu0 0.0
    %498 = vmatpush1.msra.mxu0 0.0
    %499 = vmatprep.subr.mxu0 0.0
    %500 = vmatpush1.msra.mxu0 0.0
    %501 = vmatprep.subr.mxu0 0.0
    %502 = vmatpush1.msra.mxu0 0.0
    %503 = vmatprep.subr.mxu0 0.0
    %504 = vmatpush1.msra.mxu0 0.0
    %505 = vmatprep.subr.mxu0 0.0
    %506 = vmatpush1.msra.mxu0 0.0
    %507 = vmatprep.subr.mxu0 0.0
    %508 = vmatpush1.msra.mxu0 0.0
    %509 = vmatprep.subr.mxu0 0.0
    %510 = vmatpush1.msra.mxu0 0.0
    %511 = vmatprep.subr.mxu0 0.0
    %512 = vmatpush1.msra.mxu0 0.0
    %513 = vmatprep.subr.mxu0 0.0
    %514 = vmatpush1.msra.mxu0 0.0
    %515 = vmatprep.subr.mxu0 0.0
    %516 = vmatpush1.msra.mxu0 0.0
    %517 = vmatprep.subr.mxu0 0.0
    %518 = vmatpush1.msra.mxu0 0.0
    %519 = vmatprep.mubr.f32.mxu0 0.0
    %520 = vmatmul.mubr.f32.gmra.mrb[0].mxu0 %v417
    %v521 = vpop.f32.mrb[0].mxu0
    %v522 = vadd.f32 %v415, %v521
    %v523 = vpop.f32.mrb[0].mxu0
    %524 = vmatprep.mubr.f32.mxu0 0.0
    %525 = vmatmul.mubr.f32.gmra.mrb[0].mxu0 %v420
    %v526 = vpop.f32.mrb[0].mxu0
    %v527 = vadd.f32 %v415, %v526
    %v528 = vpop.f32.mrb[0].mxu0
    %529 = vmatprep.mubr.f32.mxu0 0.0
    %530 = vmatmul.mubr.f32.gmra.mrb[0].mxu0 %v423
    %v531 = vpop.f32.mrb[0].mxu0
    %v532 = vadd.f32 %v415, %v531
    %v533 = vpop.f32.mrb[0].mxu0
    %534 = vmatprep.mubr.f32.mxu0 0.0
    %535 = vmatmul.mubr.f32.gmra.mrb[0].mxu0 %v426
    %v536 = vpop.f32.mrb[0].mxu0
    %v537 = vadd.f32 %v415, %v536
    %v538 = vpop.f32.mrb[0].mxu0
    %539 = vmatprep.mubr.f32.mxu0 0.0
    %540 = vmatmul.mubr.f32.gmra.mrb[0].mxu0 %v429
    %v541 = vpop.f32.mrb[0].mxu0
    %v542 = vadd.f32 %v415, %v541
    %v543 = vpop.f32.mrb[0].mxu0
    %544 = vmatprep.mubr.f32.mxu0 0.0
    %545 = vmatmul.mubr.f32.gmra.mrb[0].mxu0 %v432
    %v546 = vpop.f32.mrb[0].mxu0
    %v547 = vadd.f32 %v415, %v546
    %v548 = vpop.f32.mrb[0].mxu0
    %549 = vmatprep.mubr.f32.mxu0 0.0
    %550 = vmatmul.mubr.f32.gmra.mrb[0].mxu0 %v435
    %v551 = vpop.f32.mrb[0].mxu0
    %v552 = vadd.f32 %v415, %v551
    %v553 = vpop.f32.mrb[0].mxu0
    %554 = vmatprep.mubr.f32.mxu0 0.0
    %555 = vmatmul.mubr.f32.gmra.mrb[0].mxu0 %v438
    %v556 = vpop.f32.mrb[0].mxu0
    %v557 = vadd.f32 %v415, %v556
    %v558 = vpop.f32.mrb[0].mxu0
    %559 = vmatprep.mubr.f32.mxu0 0.0
    %560 = vmatmul.mubr.f32.gmra.mrb[0].mxu0 %v441
    %v561 = vpop.f32.mrb[0].mxu0
    %v562 = vadd.f32 %v415, %v561
    %v563 = vpop.f32.mrb[0].mxu0
    %564 = vmatprep.mubr.f32.mxu0 0.0
    %565 = vmatmul.mubr.f32.gmra.mrb[0].mxu0 %v444
    %v566 = vpop.f32.mrb[0].mxu0
    %v567 = vadd.f32 %v415, %v566
    %v568 = vpop.f32.mrb[0].mxu0
    %569 = vmatprep.mubr.f32.mxu0 0.0
    %570 = vmatmul.mubr.f32.gmra.mrb[0].mxu0 %v447
    %v571 = vpop.f32.mrb[0].mxu0
    %v572 = vadd.f32 %v415, %v571
    %v573 = vpop.f32.mrb[0].mxu0
    %574 = vmatprep.mubr.f32.mxu0 0.0
    %575 = vmatmul.mubr.f32.gmra.mrb[0].mxu0 %v450
    %v576 = vpop.f32.mrb[0].mxu0
    %v577 = vadd.f32 %v415, %v576
    %v578 = vpop.f32.mrb[0].mxu0
    %579 = vmatprep.mubr.f32.mxu0 0.0
    %580 = vmatmul.mubr.f32.gmra.mrb[0].mxu0 %v453
    %v581 = vpop.f32.mrb[0].mxu0
    %v582 = vadd.f32 %v415, %v581
    %v583 = vpop.f32.mrb[0].mxu0
    %584 = vdwg.mxu0
    %v585 = vmax.f32 %v522, -20.0
    %v586 = vmax.f32 %v527, -20.0
    %v587 = vmax.f32 %v532, -20.0
    %v588 = vmax.f32 %v537, -20.0
    %v589 = vmax.f32 %v542, -20.0
    %v590 = vmax.f32 %v547, -20.0
    %v591 = vmax.f32 %v552, -20.0
    %v592 = vmax.f32 %v557, -20.0
    %v593 = vmax.f32 %v562, -20.0
    %v594 = vmax.f32 %v567, -20.0
    %v595 = vmax.f32 %v572, -20.0
    %v596 = vmax.f32 %v577, -20.0
    %v597 = vmax.f32 %v582, -20.0
    %v598 = vmin.f32 %v585, 2.0
    %v599 = vmin.f32 %v586, 2.0
    %v600 = vmin.f32 %v587, 2.0
    %v601 = vmin.f32 %v588, 2.0
    %v602 = vmin.f32 %v589, 2.0
    %v603 = vmin.f32 %v590, 2.0
    %v604 = vmin.f32 %v591, 2.0
    %v605 = vmin.f32 %v592, 2.0
    %v606 = vmin.f32 %v593, 2.0
    %v607 = vmin.f32 %v594, 2.0
    %v608 = vmin.f32 %v595, 2.0
    %v609 = vmin.f32 %v596, 2.0
    %v610 = vmin.f32 %v597, 2.0
    %v611 = vmul.f32 %v598, 1.442695
    %v612 = vpow.pop %v611
    %v613 = vmul.f32 %v599, 1.442695
    %v614 = vpow.pop %v613
    %v615 = vmul.f32 %v600, 1.442695
    %v616 = vpow.pop %v615
    %v617 = vmul.f32 %v601, 1.442695
    %v618 = vpow.pop %v617
    %v619 = vmul.f32 %v602, 1.442695
    %v620 = vpow.pop %v619
    %v621 = vmul.f32 %v603, 1.442695
    %v622 = vpow.pop %v621
    %v623 = vmul.f32 %v604, 1.442695
    %v624 = vpow.pop %v623
    %v625 = vmul.f32 %v605, 1.442695
    %v626 = vpow.pop %v625
    %v627 = vmul.f32 %v606, 1.442695
    %v628 = vpow.pop %v627
    %v629 = vmul.f32 %v607, 1.442695
    %v630 = vpow.pop %v629
    %v631 = vmul.f32 %v608, 1.442695
    %v632 = vpow.pop %v631
    %v633 = vmul.f32 %v609, 1.442695
    %v634 = vpow.pop %v633
    %v635 = vmul.f32 %v610, 1.442695
    %v636 = vpow.pop %v635
    %637 = vrot.lane.b32.xlu0 %v12, 120
    %v638 = vpop.permute.xlu0 %637
    %639 = vrot.lane.b32.xlu0 %v13, 120
    %v640 = vpop.permute.xlu0 %639
    %641 = vrot.lane.b32.xlu0 %v14, 120
    %v642 = vpop.permute.xlu0 %641
    %643 = vrot.lane.b32.xlu0 %v15, 120
    %v644 = vpop.permute.xlu0 %643
    %645 = vrot.lane.b32.xlu0 %v16, 120
    %v646 = vpop.permute.xlu0 %645
    %647 = vrot.lane.b32.xlu0 %v17, 120
    %v648 = vpop.permute.xlu0 %647
    %649 = vrot.lane.b32.xlu0 %v18, 120
    %v650 = vpop.permute.xlu0 %649
    %651 = vrot.lane.b32.xlu0 %v19, 120
    %v652 = vpop.permute.xlu0 %651
    %653 = vrot.lane.b32.xlu0 %v20, 120
    %v654 = vpop.permute.xlu0 %653
    %655 = vrot.lane.b32.xlu0 %v21, 120
    %v656 = vpop.permute.xlu0 %655
    %657 = vrot.lane.b32.xlu0 %v22, 120
    %v658 = vpop.permute.xlu0 %657
    %659 = vrot.lane.b32.xlu0 %v23, 120
    %v660 = vpop.permute.xlu0 %659
    %661 = vrot.lane.b32.xlu0 %v24, 120
    %v662 = vpop.permute.xlu0 %661
    %v676 = vmul.f32 %v612, %v638
    %v677 = vmul.f32 %v614, %v640
    %v678 = vmul.f32 %v616, %v642
    %v679 = vmul.f32 %v618, %v644
    %v680 = vmul.f32 %v620, %v646
    %v681 = vmul.f32 %v622, %v648
    %v682 = vmul.f32 %v624, %v650
    %v683 = vmul.f32 %v626, %v652
    %v684 = vmul.f32 %v628, %v654
    %v685 = vmul.f32 %v630, %v656
    %v686 = vmul.f32 %v632, %v658
    %v687 = vmul.f32 %v634, %v660
    %v688 = vmul.f32 %v636, %v662
    %702 = vrot.lane.b32.xlu0 %v676, 120
    %v703 = vpop.permute.xlu0 %702
    %704 = vrot.lane.b32.xlu0 %v677, 120
    %v705 = vpop.permute.xlu0 %704
    %706 = vrot.lane.b32.xlu0 %v678, 120
    %v707 = vpop.permute.xlu0 %706
    %708 = vrot.lane.b32.xlu0 %v679, 120
    %v709 = vpop.permute.xlu0 %708
    %710 = vrot.lane.b32.xlu0 %v680, 120
    %v711 = vpop.permute.xlu0 %710
    %712 = vrot.lane.b32.xlu0 %v681, 120
    %v713 = vpop.permute.xlu0 %712
    %714 = vrot.lane.b32.xlu0 %v682, 120
    %v715 = vpop.permute.xlu0 %714
    %716 = vrot.lane.b32.xlu0 %v683, 120
    %v717 = vpop.permute.xlu0 %716
    %718 = vrot.lane.b32.xlu0 %v684, 120
    %v719 = vpop.permute.xlu0 %718
    %720 = vrot.lane.b32.xlu0 %v685, 120
    %v721 = vpop.permute.xlu0 %720
    %722 = vrot.lane.b32.xlu0 %v686, 120
    %v723 = vpop.permute.xlu0 %722
    %724 = vrot.lane.b32.xlu0 %v687, 120
    %v725 = vpop.permute.xlu0 %724
    %726 = vrot.lane.b32.xlu0 %v688, 120
    %v727 = vpop.permute.xlu0 %726
    %v741 = vadd.f32 %v522, %v703
    %v742 = vadd.f32 %v527, %v705
    %v743 = vadd.f32 %v532, %v707
    %v744 = vadd.f32 %v537, %v709
    %v745 = vadd.f32 %v542, %v711
    %v746 = vadd.f32 %v547, %v713
    %v747 = vadd.f32 %v552, %v715
    %v748 = vadd.f32 %v557, %v717
    %v749 = vadd.f32 %v562, %v719
    %v750 = vadd.f32 %v567, %v721
    %v751 = vadd.f32 %v572, %v723
    %v752 = vadd.f32 %v577, %v725
    %v753 = vadd.f32 %v582, %v727
    %v754 = vtanh.pop %v741
    %v755 = vtanh.pop %v742
    %v756 = vtanh.pop %v743
    %v757 = vtanh.pop %v744
    %v758 = vtanh.pop %v745
    %v759 = vtanh.pop %v746
    %v760 = vtanh.pop %v747
    %v761 = vtanh.pop %v748
    %v762 = vtanh.pop %v749
    %v763 = vtanh.pop %v750
    %v764 = vtanh.pop %v751
    %v765 = vtanh.pop %v752
    %v766 = vtanh.pop %v753
    %v767 = vtanh.pop %v522
    %v768 = vtanh.pop %v527
    %v769 = vtanh.pop %v532
    %v770 = vtanh.pop %v537
    %v771 = vtanh.pop %v542
    %v772 = vtanh.pop %v547
    %v773 = vtanh.pop %v552
    %v774 = vtanh.pop %v557
    %v775 = vtanh.pop %v562
    %v776 = vtanh.pop %v567
    %v777 = vtanh.pop %v572
    %v778 = vtanh.pop %v577
    %v779 = vtanh.pop %v582
    %v780 = vmul.f32 %v12, -0.5
    %v781 = vmul.f32 %v13, -0.5
    %v782 = vmul.f32 %v14, -0.5
    %v783 = vmul.f32 %v15, -0.5
    %v784 = vmul.f32 %v16, -0.5
    %v785 = vmul.f32 %v17, -0.5
    %v786 = vmul.f32 %v18, -0.5
    %v787 = vmul.f32 %v19, -0.5
    %v788 = vmul.f32 %v20, -0.5
    %v789 = vmul.f32 %v21, -0.5
    %v790 = vmul.f32 %v22, -0.5
    %v791 = vmul.f32 %v23, -0.5
    %v792 = vmul.f32 %v24, -0.5
    %v793 = vmul.f32 %v780, %v12
    %v794 = vmul.f32 %v781, %v13
    %v795 = vmul.f32 %v782, %v14
    %v796 = vmul.f32 %v783, %v15
    %v797 = vmul.f32 %v784, %v16
    %v798 = vmul.f32 %v785, %v17
    %v799 = vmul.f32 %v786, %v18
    %v800 = vmul.f32 %v787, %v19
    %v801 = vmul.f32 %v788, %v20
    %v802 = vmul.f32 %v789, %v21
    %v803 = vmul.f32 %v790, %v22
    %v804 = vmul.f32 %v791, %v23
    %v805 = vmul.f32 %v792, %v24
    %819 = vrot.lane.b32.xlu0 %v598, 8
    %v820 = vpop.permute.xlu0 %819
    %821 = vrot.lane.b32.xlu0 %v599, 8
    %v822 = vpop.permute.xlu0 %821
    %823 = vrot.lane.b32.xlu0 %v600, 8
    %v824 = vpop.permute.xlu0 %823
    %825 = vrot.lane.b32.xlu0 %v601, 8
    %v826 = vpop.permute.xlu0 %825
    %827 = vrot.lane.b32.xlu0 %v602, 8
    %v828 = vpop.permute.xlu0 %827
    %829 = vrot.lane.b32.xlu0 %v603, 8
    %v830 = vpop.permute.xlu0 %829
    %831 = vrot.lane.b32.xlu0 %v604, 8
    %v832 = vpop.permute.xlu0 %831
    %833 = vrot.lane.b32.xlu0 %v605, 8
    %v834 = vpop.permute.xlu0 %833
    %835 = vrot.lane.b32.xlu0 %v606, 8
    %v836 = vpop.permute.xlu0 %835
    %837 = vrot.lane.b32.xlu0 %v607, 8
    %v838 = vpop.permute.xlu0 %837
    %839 = vrot.lane.b32.xlu0 %v608, 8
    %v840 = vpop.permute.xlu0 %839
    %841 = vrot.lane.b32.xlu0 %v609, 8
    %v842 = vpop.permute.xlu0 %841
    %843 = vrot.lane.b32.xlu0 %v610, 8
    %v844 = vpop.permute.xlu0 %843
    %v858 = vsub.f32 %v793, %v820
    %v859 = vsub.f32 %v794, %v822
    %v860 = vsub.f32 %v795, %v824
    %v861 = vsub.f32 %v796, %v826
    %v862 = vsub.f32 %v797, %v828
    %v863 = vsub.f32 %v798, %v830
    %v864 = vsub.f32 %v799, %v832
    %v865 = vsub.f32 %v800, %v834
    %v866 = vsub.f32 %v801, %v836
    %v867 = vsub.f32 %v802, %v838
    %v868 = vsub.f32 %v803, %v840
    %v869 = vsub.f32 %v804, %v842
    %v870 = vsub.f32 %v805, %v844
    %v871 = vsub.f32 %v858, 0.9189385
    %v872 = vsub.f32 %v859, 0.9189385
    %v873 = vsub.f32 %v860, 0.9189385
    %v874 = vsub.f32 %v861, 0.9189385
    %v875 = vsub.f32 %v862, 0.9189385
    %v876 = vsub.f32 %v863, 0.9189385
    %v877 = vsub.f32 %v864, 0.9189385
    %v878 = vsub.f32 %v865, 0.9189385
    %v879 = vsub.f32 %v866, 0.9189385
    %v880 = vsub.f32 %v867, 0.9189385
    %v881 = vsub.f32 %v868, 0.9189385
    %v882 = vsub.f32 %v869, 0.9189385
    %v883 = vsub.f32 %v870, 0.9189385
    %v884 = vmul.f32 %v754, %v754
    %v885 = vmul.f32 %v755, %v755
    %v886 = vmul.f32 %v756, %v756
    %v887 = vmul.f32 %v757, %v757
    %v888 = vmul.f32 %v758, %v758
    %v889 = vmul.f32 %v759, %v759
    %v890 = vmul.f32 %v760, %v760
    %v891 = vmul.f32 %v761, %v761
    %v892 = vmul.f32 %v762, %v762
    %v893 = vmul.f32 %v763, %v763
    %v894 = vmul.f32 %v764, %v764
    %v895 = vmul.f32 %v765, %v765
    %v896 = vmul.f32 %v766, %v766
    %v897 = vsub.f32 1.0, %v884
    %v898 = vsub.f32 1.0, %v885
    %v899 = vsub.f32 1.0, %v886
    %v900 = vsub.f32 1.0, %v887
    %v901 = vsub.f32 1.0, %v888
    %v902 = vsub.f32 1.0, %v889
    %v903 = vsub.f32 1.0, %v890
    %v904 = vsub.f32 1.0, %v891
    %v905 = vsub.f32 1.0, %v892
    %v906 = vsub.f32 1.0, %v893
    %v907 = vsub.f32 1.0, %v894
    %v908 = vsub.f32 1.0, %v895
    %v909 = vsub.f32 1.0, %v896
    %v910 = vadd.f32 %v897, 1e-06
    %v911 = vadd.f32 %v898, 1e-06
    %v912 = vadd.f32 %v899, 1e-06
    %v913 = vadd.f32 %v900, 1e-06
    %v914 = vadd.f32 %v901, 1e-06
    %v915 = vadd.f32 %v902, 1e-06
    %v916 = vadd.f32 %v903, 1e-06
    %v917 = vadd.f32 %v904, 1e-06
    %v918 = vadd.f32 %v905, 1e-06
    %v919 = vadd.f32 %v906, 1e-06
    %v920 = vadd.f32 %v907, 1e-06
    %v921 = vadd.f32 %v908, 1e-06
    %v922 = vadd.f32 %v909, 1e-06
    %v923 = vlog2.pop %v910
    %v924 = vmul.f32 %v923, 0.6931472
    %v925 = vlog2.pop %v911
    %v926 = vmul.f32 %v925, 0.6931472
    %v927 = vlog2.pop %v912
    %v928 = vmul.f32 %v927, 0.6931472
    %v929 = vlog2.pop %v913
    %v930 = vmul.f32 %v929, 0.6931472
    %v931 = vlog2.pop %v914
    %v932 = vmul.f32 %v931, 0.6931472
    %v933 = vlog2.pop %v915
    %v934 = vmul.f32 %v933, 0.6931472
    %v935 = vlog2.pop %v916
    %v936 = vmul.f32 %v935, 0.6931472
    %v937 = vlog2.pop %v917
    %v938 = vmul.f32 %v937, 0.6931472
    %v939 = vlog2.pop %v918
    %v940 = vmul.f32 %v939, 0.6931472
    %v941 = vlog2.pop %v919
    %v942 = vmul.f32 %v941, 0.6931472
    %v943 = vlog2.pop %v920
    %v944 = vmul.f32 %v943, 0.6931472
    %v945 = vlog2.pop %v921
    %v946 = vmul.f32 %v945, 0.6931472
    %v947 = vlog2.pop %v922
    %v948 = vmul.f32 %v947, 0.6931472
    %962 = vrot.lane.b32.xlu0 %v924, 16
    %v963 = vpop.permute.xlu0 %962
    %964 = vrot.lane.b32.xlu0 %v926, 16
    %v965 = vpop.permute.xlu0 %964
    %966 = vrot.lane.b32.xlu0 %v928, 16
    %v967 = vpop.permute.xlu0 %966
    %968 = vrot.lane.b32.xlu0 %v930, 16
    %v969 = vpop.permute.xlu0 %968
    %970 = vrot.lane.b32.xlu0 %v932, 16
    %v971 = vpop.permute.xlu0 %970
    %972 = vrot.lane.b32.xlu0 %v934, 16
    %v973 = vpop.permute.xlu0 %972
    %974 = vrot.lane.b32.xlu0 %v936, 16
    %v975 = vpop.permute.xlu0 %974
    %976 = vrot.lane.b32.xlu0 %v938, 16
    %v977 = vpop.permute.xlu0 %976
    %978 = vrot.lane.b32.xlu0 %v940, 16
    %v979 = vpop.permute.xlu0 %978
    %980 = vrot.lane.b32.xlu0 %v942, 16
    %v981 = vpop.permute.xlu0 %980
    %982 = vrot.lane.b32.xlu0 %v944, 16
    %v983 = vpop.permute.xlu0 %982
    %984 = vrot.lane.b32.xlu0 %v946, 16
    %v985 = vpop.permute.xlu0 %984
    %986 = vrot.lane.b32.xlu0 %v948, 16
    %v987 = vpop.permute.xlu0 %986
    %v1001 = vsub.f32 %v871, %v963
    %v1002 = vsub.f32 %v872, %v965
    %v1003 = vsub.f32 %v873, %v967
    %v1004 = vsub.f32 %v874, %v969
    %v1005 = vsub.f32 %v875, %v971
    %v1006 = vsub.f32 %v876, %v973
    %v1007 = vsub.f32 %v877, %v975
    %v1008 = vsub.f32 %v878, %v977
    %v1009 = vsub.f32 %v879, %v979
    %v1010 = vsub.f32 %v880, %v981
    %v1011 = vsub.f32 %v881, %v983
    %v1012 = vsub.f32 %v882, %v985
    %v1013 = vsub.f32 %v883, %v987
    %1027 = vrot.lane.b32.xlu0 %v1001, 112
    %v1028 = vpop.permute.xlu0 %1027
    %1029 = vrot.lane.b32.xlu0 %v1002, 112
    %v1030 = vpop.permute.xlu0 %1029
    %1031 = vrot.lane.b32.xlu0 %v1003, 112
    %v1032 = vpop.permute.xlu0 %1031
    %1033 = vrot.lane.b32.xlu0 %v1004, 112
    %v1034 = vpop.permute.xlu0 %1033
    %1035 = vrot.lane.b32.xlu0 %v1005, 112
    %v1036 = vpop.permute.xlu0 %1035
    %1037 = vrot.lane.b32.xlu0 %v1006, 112
    %v1038 = vpop.permute.xlu0 %1037
    %1039 = vrot.lane.b32.xlu0 %v1007, 112
    %v1040 = vpop.permute.xlu0 %1039
    %1041 = vrot.lane.b32.xlu0 %v1008, 112
    %v1042 = vpop.permute.xlu0 %1041
    %1043 = vrot.lane.b32.xlu0 %v1009, 112
    %v1044 = vpop.permute.xlu0 %1043
    %1045 = vrot.lane.b32.xlu0 %v1010, 112
    %v1046 = vpop.permute.xlu0 %1045
    %1047 = vrot.lane.b32.xlu0 %v1011, 112
    %v1048 = vpop.permute.xlu0 %1047
    %1049 = vrot.lane.b32.xlu0 %v1012, 112
    %v1050 = vpop.permute.xlu0 %1049
    %1051 = vrot.lane.b32.xlu0 %v1013, 112
    %v1052 = vpop.permute.xlu0 %1051
    %vm1066 = vcmask 64512
    %v1067 = vsel %vm1066, %v1028, 0.0
    %1068 = vadd.xlane.f32.xlu0 %v1067
    %v1069 = vpop.xlane.xlu0 %1068
    %v1070 = vsel %vm1066, %v1030, 0.0
    %1071 = vadd.xlane.f32.xlu0 %v1070
    %v1072 = vpop.xlane.xlu0 %1071
    %v1073 = vsel %vm1066, %v1032, 0.0
    %1074 = vadd.xlane.f32.xlu0 %v1073
    %v1075 = vpop.xlane.xlu0 %1074
    %v1076 = vsel %vm1066, %v1034, 0.0
    %1077 = vadd.xlane.f32.xlu0 %v1076
    %v1078 = vpop.xlane.xlu0 %1077
    %v1079 = vsel %vm1066, %v1036, 0.0
    %1080 = vadd.xlane.f32.xlu0 %v1079
    %v1081 = vpop.xlane.xlu0 %1080
    %v1082 = vsel %vm1066, %v1038, 0.0
    %1083 = vadd.xlane.f32.xlu0 %v1082
    %v1084 = vpop.xlane.xlu0 %1083
    %v1085 = vsel %vm1066, %v1040, 0.0
    %1086 = vadd.xlane.f32.xlu0 %v1085
    %v1087 = vpop.xlane.xlu0 %1086
    %v1088 = vsel %vm1066, %v1042, 0.0
    %1089 = vadd.xlane.f32.xlu0 %v1088
    %v1090 = vpop.xlane.xlu0 %1089
    %v1091 = vsel %vm1066, %v1044, 0.0
    %1092 = vadd.xlane.f32.xlu0 %v1091
    %v1093 = vpop.xlane.xlu0 %1092
    %v1094 = vsel %vm1066, %v1046, 0.0
    %1095 = vadd.xlane.f32.xlu0 %v1094
    %v1096 = vpop.xlane.xlu0 %1095
    %v1097 = vsel %vm1066, %v1048, 0.0
    %1098 = vadd.xlane.f32.xlu0 %v1097
    %v1099 = vpop.xlane.xlu0 %1098
    %v1100 = vsel %vm1066, %v1050, 0.0
    %1101 = vadd.xlane.f32.xlu0 %v1100
    %v1102 = vpop.xlane.xlu0 %1101
    %v1103 = vsel %vm1066, %v1052, 0.0
    %1104 = vadd.xlane.f32.xlu0 %v1103
    %v1105 = vpop.xlane.xlu0 %1104
    %1119 = vrot.lane.b32.xlu0 %v767, 8
    %v1120 = vpop.permute.xlu0 %1119
    %1121 = vrot.lane.b32.xlu0 %v768, 8
    %v1122 = vpop.permute.xlu0 %1121
    %1123 = vrot.lane.b32.xlu0 %v769, 8
    %v1124 = vpop.permute.xlu0 %1123
    %1125 = vrot.lane.b32.xlu0 %v770, 8
    %v1126 = vpop.permute.xlu0 %1125
    %1127 = vrot.lane.b32.xlu0 %v771, 8
    %v1128 = vpop.permute.xlu0 %1127
    %1129 = vrot.lane.b32.xlu0 %v772, 8
    %v1130 = vpop.permute.xlu0 %1129
    %1131 = vrot.lane.b32.xlu0 %v773, 8
    %v1132 = vpop.permute.xlu0 %1131
    %1133 = vrot.lane.b32.xlu0 %v774, 8
    %v1134 = vpop.permute.xlu0 %1133
    %1135 = vrot.lane.b32.xlu0 %v775, 8
    %v1136 = vpop.permute.xlu0 %1135
    %1137 = vrot.lane.b32.xlu0 %v776, 8
    %v1138 = vpop.permute.xlu0 %1137
    %1139 = vrot.lane.b32.xlu0 %v777, 8
    %v1140 = vpop.permute.xlu0 %1139
    %1141 = vrot.lane.b32.xlu0 %v778, 8
    %v1142 = vpop.permute.xlu0 %1141
    %1143 = vrot.lane.b32.xlu0 %v779, 8
    %v1144 = vpop.permute.xlu0 %1143
    %v1158 = vsel %vm1066, %v754, %v1120
    %v1159 = vsel %vm1066, %v755, %v1122
    %v1160 = vsel %vm1066, %v756, %v1124
    %v1161 = vsel %vm1066, %v757, %v1126
    %v1162 = vsel %vm1066, %v758, %v1128
    %v1163 = vsel %vm1066, %v759, %v1130
    %v1164 = vsel %vm1066, %v760, %v1132
    %v1165 = vsel %vm1066, %v761, %v1134
    %v1166 = vsel %vm1066, %v762, %v1136
    %v1167 = vsel %vm1066, %v763, %v1138
    %v1168 = vsel %vm1066, %v764, %v1140
    %v1169 = vsel %vm1066, %v765, %v1142
    %v1170 = vsel %vm1066, %v766, %v1144
    %v1171 = vsel %vm42, %v1158, %v1069
    %v1172 = vsel %vm42, %v1159, %v1072
    %v1173 = vsel %vm42, %v1160, %v1075
    %v1174 = vsel %vm42, %v1161, %v1078
    %v1175 = vsel %vm42, %v1162, %v1081
    %v1176 = vsel %vm42, %v1163, %v1084
    %v1177 = vsel %vm42, %v1164, %v1087
    %v1178 = vsel %vm42, %v1165, %v1090
    %v1179 = vsel %vm42, %v1166, %v1093
    %v1180 = vsel %vm42, %v1167, %v1096
    %v1181 = vsel %vm42, %v1168, %v1099
    %v1182 = vsel %vm42, %v1169, %v1102
    %v1183 = vsel %vm42, %v1170, %v1105
    %vm1184 = vcmask 138240
    %v1185 = vsel %vm1184, %v1171, 0.0
    %v1186 = vsel %vm1184, %v1172, 0.0
    %v1187 = vsel %vm1184, %v1173, 0.0
    %v1188 = vsel %vm1184, %v1174, 0.0
    %v1189 = vsel %vm1184, %v1175, 0.0
    %v1190 = vsel %vm1184, %v1176, 0.0
    %v1191 = vsel %vm1184, %v1177, 0.0
    %v1192 = vsel %vm1184, %v1178, 0.0
    %v1193 = vsel %vm1184, %v1179, 0.0
    %v1194 = vsel %vm1184, %v1180, 0.0
    %v1195 = vsel %vm1184, %v1181, 0.0
    %v1196 = vsel %vm1184, %v1182, 0.0
    %v1197 = vsel %vm1184, %v1183, 0.0
    %1198 = vst [vmem:[#allocation2] sm:$0xff] %v1185
    %1199 = vst [vmem:[#allocation2 + $0x8] sm:$0xff] %v1186
    %1200 = vst [vmem:[#allocation2 + $0x10] sm:$0xff] %v1187
    %1201 = vst [vmem:[#allocation2 + $0x18] sm:$0xff] %v1188
    %1202 = vst [vmem:[#allocation2 + $0x20] sm:$0xff] %v1189
    %1203 = vst [vmem:[#allocation2 + $0x28] sm:$0xff] %v1190
    %1204 = vst [vmem:[#allocation2 + $0x30] sm:$0xff] %v1191
    %1205 = vst [vmem:[#allocation2 + $0x38] sm:$0xff] %v1192
    %1206 = vst [vmem:[#allocation2 + $0x40] sm:$0xff] %v1193
    %1207 = vst [vmem:[#allocation2 + $0x48] sm:$0xff] %v1194
    %1208 = vst [vmem:[#allocation2 + $0x50] sm:$0xff] %v1195
    %1209 = vst [vmem:[#allocation2 + $0x58] sm:$0xff] %v1196
    %1210 = vst [vmem:[#allocation2 + $0x60] sm:$0xff] %v1197
    // Predicated region
    $region10: #{tpu_custom_call.1} parent=1 // pred_check
      _
    $region11: #{tpu_custom_call.1} parent=1 // pred_check_branch
      %1212 = sbr.rel (0) target = $region13
    $region12: #{tpu_custom_call.1} parent=1 // pred_region
      %s1214 = ssub.s32 1664, 1664
      %1215 = vsyncadd [#allocation3], %s1214
      %s1216 = sshll.u32 [#allocation2], 4
      %s1217 = int_to_ptr.vmem [resolvable:$true] %s1216
      %1222 = dma.vmem_to_hbm [thread:$0]  %s1217, 1664, %s2, [#allocation3], 128, 128, 8
    $region13: #{tpu_custom_call.1} parent=1 // pred_fallthru
      _
    // Predicated region
    $region14: #{tpu_custom_call.1} parent=1 // pred_check
      _
    $region15: #{tpu_custom_call.1} parent=1 // pred_check_branch
      %1224 = sbr.rel (0) target = $region17
    $region16: #{tpu_custom_call.1} parent=1 // pred_region
      %1225 = dma.done [#allocation3], 1664
    $region17: #{tpu_custom_call.1} parent=1 // pred_fallthru
      _
    %1226 = vsyncpa [#allocation3], 1

</llo_original>
